<compile_context>
chip_gen: v6e
topology: v6e:2x2x1
jax: 0.10.0
libtpu: 0.0.40
codegen_flags: <defaults>
</compile_context>

<pallas_src>
import functools

import jax
import jax.numpy as jnp
from jax import lax
from jax.experimental import pallas as pl
from jax.experimental.pallas import tpu as pltpu


def _round_up(x, m):
    return (x + m - 1) // m * m


_VMEM_BUDGET = 24 * 1024 * 1024   # double-buffered working-set cap (safe on v7x)
_VMEM_LIMIT = 32 * 1024 * 1024    # raise v5e's 16 MiB scoped default; v6e/v7x default


def _choose_tiles(B, T, M, itemsize):
    """Pick (b_tile, t_tile).  Prefer full-row tiles (t_tile == T, no padding, no
    per-row accumulation work); pick the largest batch block whose double-buffered
    working set fits the VMEM budget.  Fall back to 128-aligned T tiles for very
    long T (overhang is handled by the length mask)."""
    def footprint(bt, tt):
        mel_btm = bt * _round_up(tt, 8) * _round_up(M, 128) * itemsize   # (bt, tt, M)
        mel_bmt = bt * _round_up(M, 8) * _round_up(tt, 128) * itemsize   # (bt, M, tt)
        gate = bt * 8 * _round_up(T, 128) * itemsize                     # (bt, 1, T)
        return 2 * (2 * mel_btm + mel_bmt + 2 * gate)                    # double-buffered

    for bt in (8, 4, 2, 1):
        if B % bt == 0 and footprint(bt, T) <= _VMEM_BUDGET:
            return bt, T
    # Very long T: single batch row, tile T (multiple of 128 => mel_target lane dim ok).
    tt = 128
    for cand in (4096, 2048, 1024, 512, 256):
        if cand < T and footprint(1, cand) <= _VMEM_BUDGET:
            tt = cand
            break
    if T % 128 == 0:               # keep even tiling (no overhang) when possible
        while tt > 128 and T % tt != 0:
            tt //= 2
    return 1, tt


def _clamped_mel_maps(b_tile, t_tile):
    """Index maps that clamp the T-block index to the last tile containing valid
    frames for this batch block; fully-padded tiles repeat the previous block
    index so Pallas skips their DMA (mask already zeroes their contribution)."""
    def t_limit(b, lens):
        mx = lens[b * b_tile]
        for r in range(1, b_tile):
            mx = jnp.maximum(mx, lens[b * b_tile + r])
        return jnp.maximum((mx - 1) // t_tile, 0)

    def btm(b, t, lens):   # (B, T, M) tensors
        return (b, jnp.minimum(t, t_limit(b, lens)), 0)

    def bmt(b, t, lens):   # (B, M, T) tensor
        return (b, 0, jnp.minimum(t, t_limit(b, lens)))

    return btm, bmt


def _tacotron2_loss_kernel(len_ref,
                           mel_out_ref, mel_post_ref, mel_tgt_ref,
                           gate_out_ref, gate_tgt_ref,
                           out_sq_ref, out_bce_ref,
                           acc_ref,
                           *, b_tile, t_tile):
    b = pl.program_id(0)
    t = pl.program_id(1)
    n_t = pl.num_programs(1)
    b0 = b * b_tile

    @pl.when(t == 0)
    def _init():
        acc_ref[...] = jnp.zeros_like(acc_ref)

    # Length mask as a (t_tile, 1) column; built once per step, broadcast across M.
    t_ids = t * t_tile + lax.broadcasted_iota(jnp.int32, (t_tile, 1), 0)

    partial = jnp.float32(0.0)
    for r in range(b_tile):                                      # unrolled, b_tile <= 8
        length = len_ref[b0 + r]                                 # scalar int32 (SMEM)
        pad = t_ids >= length                                    # (t_tile, 1) bool
        mo = mel_out_ref[r].astype(jnp.float32)                  # (t_tile, M)
        mp = mel_post_ref[r].astype(jnp.float32)                 # (t_tile, M)
        # target arrives in native (M, t_tile) layout; transpose the tile on XLU.
        mt = jnp.transpose(mel_tgt_ref[r]).astype(jnp.float32)   # (t_tile, M)
        d1 = mo - mt
        d2 = mp - mt
        partial = partial + jnp.sum(jnp.where(pad, 0.0, d1 * d1 + d2 * d2))
    acc_ref[...] = acc_ref[...] + partial

    @pl.when(t == n_t - 1)
    def _finalize():
        out_sq_ref[...] = acc_ref[...]
        # Gate BCE over the full, resident (b_tile, 1, T) block (one DMA per b block).
        x = gate_out_ref[...].astype(jnp.float32)
        y = gate_tgt_ref[...].astype(jnp.float32)
        bce = jnp.maximum(x, 0.0) - x * y + jnp.log1p(jnp.exp(-jnp.abs(x)))
        out_bce_ref[...] = jnp.full(out_bce_ref.shape, jnp.sum(bce), dtype=jnp.float32)


def tacotron2_loss(mel_out_postnet, mel_out, gate_out,
                   mel_target, gate_target, mel_lengths):
    """model_outputs = (mel_out_postnet, mel_out, gate_out, _alignments)
       targets       = (mel_target, gate_target, mel_lengths)

    mel_out / mel_out_postnet: (B, T, n_mels)   (decoder layout)
    mel_target:                (B, n_mels, T)   (native layout, NOT transposed here)
    gate_out / gate_target:    (B, T)
    mel_lengths:               (B,) int, max(lengths) == T
    """
    B, T, M = mel_out.shape
    assert mel_target.shape == (B, M, T)

    lengths = mel_lengths.astype(jnp.int32).reshape(B)
    gate_out3 = gate_out.reshape(B, 1, T)        # free metadata reshape
    gate_tgt3 = gate_target.reshape(B, 1, T)

    itemsize = jnp.dtype(mel_out.dtype).itemsize
    b_tile, t_tile = _choose_tiles(B, T, M, itemsize)
    n_b = B // b_tile
    n_t = pl.cdiv(T, t_tile)

    if n_t > 1:
        mel_btm_map, mel_bmt_map = _clamped_mel_maps(b_tile, t_tile)
    else:
        mel_btm_map = lambda b, t, lens: (b, t, 0)
        mel_bmt_map = lambda b, t, lens: (b, 0, t)

    kernel = functools.partial(_tacotron2_loss_kernel, b_tile=b_tile, t_tile=t_tile)

    cost = pl.CostEstimate(
        flops=9 * B * T * M + 8 * B * T,
        transcendentals=2 * B * T,
        bytes_accessed=3 * B * T * M * itemsize
        + 2 * B * T * jnp.dtype(gate_out.dtype).itemsize
        + 2 * n_b * 8 * 128 * 4,
    )

    out_sq, out_bce = pl.pallas_call(
        kernel,
        out_shape=(jax.ShapeDtypeStruct((n_b, 8, 128), jnp.float32),
                   jax.ShapeDtypeStruct((n_b, 8, 128), jnp.float32)),
        grid_spec=pltpu.PrefetchScalarGridSpec(
            num_scalar_prefetch=1,
            grid=(n_b, n_t),
            in_specs=[
                pl.BlockSpec((b_tile, t_tile, M), mel_btm_map),          # mel_out
                pl.BlockSpec((b_tile, t_tile, M), mel_btm_map),          # mel_out_postnet
                pl.BlockSpec((b_tile, M, t_tile), mel_bmt_map),          # mel_target (native)
                pl.BlockSpec((b_tile, 1, T), lambda b, t, lens: (b, 0, 0)),   # gate_out
                pl.BlockSpec((b_tile, 1, T), lambda b, t, lens: (b, 0, 0)),   # gate_target
            ],
            out_specs=[
                pl.BlockSpec((1, 8, 128), lambda b, t, lens: (b, 0, 0)),
                pl.BlockSpec((1, 8, 128), lambda b, t, lens: (b, 0, 0)),
            ],
            scratch_shapes=[pltpu.VMEM((1, 8, 128), jnp.float32)],
        ),
        compiler_params=pltpu.CompilerParams(
            dimension_semantics=("parallel", "arbitrary"),
            vmem_limit_bytes=_VMEM_LIMIT),
        cost_estimate=cost,
    )(lengths, mel_out, mel_out_postnet, mel_target, gate_out3, gate_tgt3)

    sq_total = jnp.sum(out_sq[:, 0, 0])
    bce_total = jnp.sum(out_bce[:, 0, 0])
    loss_mel = sq_total / jnp.float32(B * M * T)     # mse(mel_out) + mse(mel_postnet)
    loss_gate = bce_total / jnp.float32(B * T)       # BCEWithLogits mean
    return loss_mel + loss_gate


if __name__ == "__main__":
    key = jax.random.PRNGKey(0)
    B, n_mels, T = 2, 8, 128
    k1, k2, k3, k4, k5 = jax.random.split(key, 5)

    # model outputs: mel in (B, T, n_mels) decoder layout, gate logits (B, T)
    mel_out = jax.random.normal(k1, (B, T, n_mels), jnp.float32)
    mel_out_postnet = jax.random.normal(k2, (B, T, n_mels), jnp.float32)
    gate_out = jax.random.normal(k4, (B, T), jnp.float32)
    # targets: mel_target in native (B, n_mels, T), gate_target in {0,1}, max(len) == T
    mel_target = jax.random.normal(k3, (B, n_mels, T), jnp.float32)
    gate_target = (jax.random.uniform(k5, (B, T)) > 0.5).astype(jnp.float32)
    mel_lengths = jnp.array([T, T - 35], dtype=jnp.int32)

    loss = tacotron2_loss(mel_out_postnet, mel_out, gate_out,
                          mel_target, gate_target, mel_lengths)
    jax.block_until_ready(loss)

    # pure-JAX reference mirroring the PyTorch semantics
    def ref():
        mo = jnp.transpose(mel_out, (0, 2, 1))
        mp = jnp.transpose(mel_out_postnet, (0, 2, 1))
        pad = (jnp.arange(T)[None, :] >= mel_lengths[:, None])[:, None, :]
        mo_m = jnp.where(pad, 0.0, mo)
        mp_m = jnp.where(pad, 0.0, mp)
        mt_m = jnp.where(pad, 0.0, mel_target)
        loss_mel = jnp.mean((mo_m - mt_m) ** 2) + jnp.mean((mp_m - mt_m) ** 2)
        x, y = gate_out, gate_target
        loss_gate = jnp.mean(jnp.maximum(x, 0.0) - x * y
                             + jnp.log1p(jnp.exp(-jnp.abs(x))))
        return loss_mel + loss_gate

    r = ref()
    assert jnp.allclose(loss, r, rtol=1e-5, atol=1e-5), (loss, r)
    print("KERNEL_OK")
</pallas_src>

<mosaic_0001>
module attributes {stable_mosaic.version = 11 : i64} {
  func.func @_tacotron2_loss_kernel(%arg0: i32, %arg1: i32, %arg2: memref<2xi32, #tpu.memory_space<smem>>, %arg3: memref<2x128x8xf32, #tpu.memory_space<vmem>>, %arg4: memref<2x128x8xf32, #tpu.memory_space<vmem>>, %arg5: memref<2x8x128xf32, #tpu.memory_space<vmem>>, %arg6: memref<2x1x128xf32, #tpu.memory_space<vmem>>, %arg7: memref<2x1x128xf32, #tpu.memory_space<vmem>>, %arg8: memref<1x8x128xf32, #tpu.memory_space<vmem>>, %arg9: memref<1x8x128xf32, #tpu.memory_space<vmem>>, %arg10: memref<1x8x128xf32, #tpu.memory_space<vmem>>) attributes {dimension_semantics = [#tpu.dimension_semantics<parallel>, #tpu.dimension_semantics<arbitrary>], iteration_bounds = array<i64: 1, 1>, scalar_prefetch = 1 : i64, scratch_operands = 1 : i64, tpu.core_type = #tpu.core_type<tc>, window_params = [{transform_indices = @transform_0, window_bounds = array<i64: 2, 128, 8>}, {transform_indices = @transform_1, window_bounds = array<i64: 2, 128, 8>}, {transform_indices = @transform_2, window_bounds = array<i64: 2, 8, 128>}, {transform_indices = @transform_3, window_bounds = array<i64: 2, 1, 128>}, {transform_indices = @transform_4, window_bounds = array<i64: 2, 1, 128>}, {transform_indices = @transform_5, window_bounds = array<i64: 1, 8, 128>}, {transform_indices = @transform_6, window_bounds = array<i64: 1, 8, 128>}]} {
    %c2_i32 = arith.constant 2 : i32
    %0 = arith.muli %arg0, %c2_i32 : i32
    %c0_i32 = arith.constant 0 : i32
    %1 = arith.cmpi eq, %arg1, %c0_i32 : i32
    %2 = arith.extui %1 : i1 to i32
    %c0_i32_0 = arith.constant 0 : i32
    %3 = arith.cmpi ne, %2, %c0_i32_0 : i32
    scf.if %3 {
      %cst_30 = arith.constant 0.000000e+00 : f32
      %67 = vector.broadcast %cst_30 : f32 to vector<1x8x128xf32>
      %c0_31 = arith.constant 0 : index
      %c0_32 = arith.constant 0 : index
      %c0_33 = arith.constant 0 : index
      %68 = vector.load %arg10[%c0_31, %c0_32, %c0_33] : memref<1x8x128xf32, #tpu.memory_space<vmem>>, vector<1x8x128xf32>
      tpu.vector_store %arg10[%c0_31, %c0_32, %c0_33], %67 {strides = array<i32>} : memref<1x8x128xf32, #tpu.memory_space<vmem>>, vector<1x8x128xf32>,
    } else {
    }
    %c128_i32 = arith.constant 128 : i32
    %4 = arith.muli %arg1, %c128_i32 : i32
    %5 = tpu.iota {dimensions = array<i32: 0>} : vector<128x1xi32>
    %6 = vector.broadcast %4 : i32 to vector<128x1xi32>
    %7 = arith.addi %6, %5 : vector<128x1xi32>
    %c0_i32_1 = arith.constant 0 : i32
    %8 = arith.addi %0, %c0_i32_1 : i32
    %9 = arith.index_cast %8 : i32 to index
    %10 = memref.load %arg2[%9] : memref<2xi32, #tpu.memory_space<smem>>
    %11 = vector.broadcast %10 : i32 to vector<128x1xi32>
    %12 = arith.cmpi sge, %7, %11 : vector<128x1xi32>
    %c0 = arith.constant 0 : index
    %c0_2 = arith.constant 0 : index
    %c0_3 = arith.constant 0 : index
    %13 = vector.load %arg3[%c0, %c0_2, %c0_3] : memref<2x128x8xf32, #tpu.memory_space<vmem>>, vector<1x128x8xf32>
    %14 = vector.shape_cast %13 : vector<1x128x8xf32> to vector<128x8xf32>
    %c0_4 = arith.constant 0 : index
    %c0_5 = arith.constant 0 : index
    %c0_6 = arith.constant 0 : index
    %15 = vector.load %arg4[%c0_4, %c0_5, %c0_6] : memref<2x128x8xf32, #tpu.memory_space<vmem>>, vector<1x128x8xf32>
    %16 = vector.shape_cast %15 : vector<1x128x8xf32> to vector<128x8xf32>
    %c0_7 = arith.constant 0 : index
    %c0_8 = arith.constant 0 : index
    %c0_9 = arith.constant 0 : index
    %17 = vector.load %arg5[%c0_7, %c0_8, %c0_9] : memref<2x8x128xf32, #tpu.memory_space<vmem>>, vector<1x8x128xf32>
    %18 = vector.shape_cast %17 : vector<1x8x128xf32> to vector<8x128xf32>
    %19 = tpu.transpose %18, [1, 0] : vector<8x128xf32> -> vector<128x8xf32>
    %20 = arith.subf %14, %19 : vector<128x8xf32>
    %21 = arith.subf %16, %19 : vector<128x8xf32>
    %22 = arith.mulf %20, %20 : vector<128x8xf32>
    %23 = arith.mulf %21, %21 : vector<128x8xf32>
    %24 = arith.addf %22, %23 : vector<128x8xf32>
    %cst = arith.constant 0.000000e+00 : f32
    %25 = vector.shape_cast %12 : vector<128x1xi1> to vector<128x1xi1>
    %26 = vector.broadcast %25 : vector<128x1xi1> to vector<128x8xi1>
    %27 = vector.broadcast %cst : f32 to vector<128x8xf32>
    %28 = arith.select %26, %27, %24 : vector<128x8xi1>, vector<128x8xf32>
    %29 = vector.shape_cast %28 : vector<128x8xf32> to vector<1x128x8xf32>
    %cst_10 = arith.constant dense<0.000000e+00> : vector<1xf32>
    %30 = vector.multi_reduction <add>, %29, %cst_10 [1, 2] : vector<1x128x8xf32> to vector<1xf32>
    %31 = vector.shape_cast %30 : vector<1xf32> to vector<1x1x1xf32>
    %32 = vector.extract %31[0, 0, 0] : f32 from vector<1x1x1xf32>
    %cst_11 = arith.constant 0.000000e+00 : f32
    %33 = arith.addf %cst_11, %32 : f32
    %c1_i32 = arith.constant 1 : i32
    %34 = arith.addi %0, %c1_i32 : i32
    %35 = arith.index_cast %34 : i32 to index
    %36 = memref.load %arg2[%35] : memref<2xi32, #tpu.memory_space<smem>>
    %37 = vector.broadcast %36 : i32 to vector<128x1xi32>
    %38 = arith.cmpi sge, %7, %37 : vector<128x1xi32>
    %c1 = arith.constant 1 : index
    %c0_12 = arith.constant 0 : index
    %c0_13 = arith.constant 0 : index
    %39 = vector.load %arg3[%c1, %c0_12, %c0_13] : memref<2x128x8xf32, #tpu.memory_space<vmem>>, vector<1x128x8xf32>
    %40 = vector.shape_cast %39 : vector<1x128x8xf32> to vector<128x8xf32>
    %c1_14 = arith.constant 1 : index
    %c0_15 = arith.constant 0 : index
    %c0_16 = arith.constant 0 : index
    %41 = vector.load %arg4[%c1_14, %c0_15, %c0_16] : memref<2x128x8xf32, #tpu.memory_space<vmem>>, vector<1x128x8xf32>
    %42 = vector.shape_cast %41 : vector<1x128x8xf32> to vector<128x8xf32>
    %c1_17 = arith.constant 1 : index
    %c0_18 = arith.constant 0 : index
    %c0_19 = arith.constant 0 : index
    %43 = vector.load %arg5[%c1_17, %c0_18, %c0_19] : memref<2x8x128xf32, #tpu.memory_space<vmem>>, vector<1x8x128xf32>
    %44 = vector.shape_cast %43 : vector<1x8x128xf32> to vector<8x128xf32>
    %45 = tpu.transpose %44, [1, 0] : vector<8x128xf32> -> vector<128x8xf32>
    %46 = arith.subf %40, %45 : vector<128x8xf32>
    %47 = arith.subf %42, %45 : vector<128x8xf32>
    %48 = arith.mulf %46, %46 : vector<128x8xf32>
    %49 = arith.mulf %47, %47 : vector<128x8xf32>
    %50 = arith.addf %48, %49 : vector<128x8xf32>
    %cst_20 = arith.constant 0.000000e+00 : f32
    %51 = vector.shape_cast %38 : vector<128x1xi1> to vector<128x1xi1>
    %52 = vector.broadcast %51 : vector<128x1xi1> to vector<128x8xi1>
    %53 = vector.broadcast %cst_20 : f32 to vector<128x8xf32>
    %54 = arith.select %52, %53, %50 : vector<128x8xi1>, vector<128x8xf32>
    %55 = vector.shape_cast %54 : vector<128x8xf32> to vector<1x128x8xf32>
    %cst_21 = arith.constant dense<0.000000e+00> : vector<1xf32>
    %56 = vector.multi_reduction <add>, %55, %cst_21 [1, 2] : vector<1x128x8xf32> to vector<1xf32>
    %57 = vector.shape_cast %56 : vector<1xf32> to vector<1x1x1xf32>
    %58 = vector.extract %57[0, 0, 0] : f32 from vector<1x1x1xf32>
    %59 = arith.addf %33, %58 : f32
    %c0_22 = arith.constant 0 : index
    %c0_23 = arith.constant 0 : index
    %c0_24 = arith.constant 0 : index
    %60 = vector.load %arg10[%c0_22, %c0_23, %c0_24] : memref<1x8x128xf32, #tpu.memory_space<vmem>>, vector<1x8x128xf32>
    %61 = vector.broadcast %59 : f32 to vector<1x8x128xf32>
    %62 = arith.addf %60, %61 : vector<1x8x128xf32>
    %c0_25 = arith.constant 0 : index
    %c0_26 = arith.constant 0 : index
    %c0_27 = arith.constant 0 : index
    %63 = vector.load %arg10[%c0_25, %c0_26, %c0_27] : memref<1x8x128xf32, #tpu.memory_space<vmem>>, vector<1x8x128xf32>
    tpu.vector_store %arg10[%c0_25, %c0_26, %c0_27], %62 {strides = array<i32>} : memref<1x8x128xf32, #tpu.memory_space<vmem>>, vector<1x8x128xf32>,
    %c0_i32_28 = arith.constant 0 : i32
    %64 = arith.cmpi eq, %arg1, %c0_i32_28 : i32
    %65 = arith.extui %64 : i1 to i32
    %c0_i32_29 = arith.constant 0 : i32
    %66 = arith.cmpi ne, %65, %c0_i32_29 : i32
    scf.if %66 {
      %c0_30 = arith.constant 0 : index
      %c0_31 = arith.constant 0 : index
      %c0_32 = arith.constant 0 : index
      %67 = vector.load %arg10[%c0_30, %c0_31, %c0_32] : memref<1x8x128xf32, #tpu.memory_space<vmem>>, vector<1x8x128xf32>
      %c0_33 = arith.constant 0 : index
      %c0_34 = arith.constant 0 : index
      %c0_35 = arith.constant 0 : index
      %68 = vector.load %arg8[%c0_33, %c0_34, %c0_35] : memref<1x8x128xf32, #tpu.memory_space<vmem>>, vector<1x8x128xf32>
      tpu.vector_store %arg8[%c0_33, %c0_34, %c0_35], %67 {strides = array<i32>} : memref<1x8x128xf32, #tpu.memory_space<vmem>>, vector<1x8x128xf32>,
      %c0_36 = arith.constant 0 : index
      %c0_37 = arith.constant 0 : index
      %c0_38 = arith.constant 0 : index
      %69 = vector.load %arg6[%c0_36, %c0_37, %c0_38] : memref<2x1x128xf32, #tpu.memory_space<vmem>>, vector<2x1x128xf32>
      %c0_39 = arith.constant 0 : index
      %c0_40 = arith.constant 0 : index
      %c0_41 = arith.constant 0 : index
      %70 = vector.load %arg7[%c0_39, %c0_40, %c0_41] : memref<2x1x128xf32, #tpu.memory_space<vmem>>, vector<2x1x128xf32>
      %cst_42 = arith.constant 0.000000e+00 : f32
      %71 = vector.broadcast %cst_42 : f32 to vector<2x1x128xf32>
      %72 = arith.maximumf %69, %71 : vector<2x1x128xf32>
      %73 = arith.mulf %69, %70 : vector<2x1x128xf32>
      %74 = arith.subf %72, %73 : vector<2x1x128xf32>
      %75 = math.absf %69 : vector<2x1x128xf32>
      %cst_43 = arith.constant 0.000000e+00 : f32
      %76 = vector.broadcast %cst_43 : f32 to vector<2x1x128xf32>
      %77 = arith.subf %76, %75 : vector<2x1x128xf32>
      %78 = math.exp %77 : vector<2x1x128xf32>
      %79 = math.log1p %78 : vector<2x1x128xf32>
      %80 = arith.addf %74, %79 : vector<2x1x128xf32>
      %81 = vector.shape_cast %80 : vector<2x1x128xf32> to vector<1x2x1x128xf32>
      %cst_44 = arith.constant dense<0.000000e+00> : vector<1xf32>
      %82 = vector.multi_reduction <add>, %81, %cst_44 [1, 2, 3] : vector<1x2x1x128xf32> to vector<1xf32>
      %83 = vector.shape_cast %82 : vector<1xf32> to vector<1x1x1x1xf32>
      %84 = vector.extract %83[0, 0, 0, 0] : f32 from vector<1x1x1x1xf32>
      %85 = vector.broadcast %84 : f32 to vector<1x8x128xf32>
      %c0_45 = arith.constant 0 : index
      %c0_46 = arith.constant 0 : index
      %c0_47 = arith.constant 0 : index
      %86 = vector.load %arg9[%c0_45, %c0_46, %c0_47] : memref<1x8x128xf32, #tpu.memory_space<vmem>>, vector<1x8x128xf32>
      tpu.vector_store %arg9[%c0_45, %c0_46, %c0_47], %85 {strides = array<i32>} : memref<1x8x128xf32, #tpu.memory_space<vmem>>, vector<1x8x128xf32>,
    } else {
    }
    return
  }
  func.func @transform_0(%arg0: i32, %arg1: i32, %arg2: memref<2xi32, #tpu.memory_space<smem>>) -> (i32, i32, i32) {
    %c0_i32 = arith.constant 0 : i32
    %c0_i32_0 = arith.constant 0 : i32
    return %arg0, %arg1, %c0_i32 : i32, i32, i32
  }
  func.func @transform_1(%arg0: i32, %arg1: i32, %arg2: memref<2xi32, #tpu.memory_space<smem>>) -> (i32, i32, i32) {
    %c0_i32 = arith.constant 0 : i32
    %c0_i32_0 = arith.constant 0 : i32
    return %arg0, %arg1, %c0_i32 : i32, i32, i32
  }
  func.func @transform_2(%arg0: i32, %arg1: i32, %arg2: memref<2xi32, #tpu.memory_space<smem>>) -> (i32, i32, i32) {
    %c0_i32 = arith.constant 0 : i32
    %c0_i32_0 = arith.constant 0 : i32
    return %arg0, %c0_i32, %arg1 : i32, i32, i32
  }
  func.func @transform_3(%arg0: i32, %arg1: i32, %arg2: memref<2xi32, #tpu.memory_space<smem>>) -> (i32, i32, i32) {
    %c0_i32 = arith.constant 0 : i32
    %c0_i32_0 = arith.constant 0 : i32
    %c0_i32_1 = arith.constant 0 : i32
    return %arg0, %c0_i32, %c0_i32_0 : i32, i32, i32
  }
  func.func @transform_4(%arg0: i32, %arg1: i32, %arg2: memref<2xi32, #tpu.memory_space<smem>>) -> (i32, i32, i32) {
    %c0_i32 = arith.constant 0 : i32
    %c0_i32_0 = arith.constant 0 : i32
    %c0_i32_1 = arith.constant 0 : i32
    return %arg0, %c0_i32, %c0_i32_0 : i32, i32, i32
  }
  func.func @transform_5(%arg0: i32, %arg1: i32, %arg2: memref<2xi32, #tpu.memory_space<smem>>) -> (i32, i32, i32) {
    %c0_i32 = arith.constant 0 : i32
    %c0_i32_0 = arith.constant 0 : i32
    %c0_i32_1 = arith.constant 0 : i32
    return %arg0, %c0_i32, %c0_i32_0 : i32, i32, i32
  }
  func.func @transform_6(%arg0: i32, %arg1: i32, %arg2: memref<2xi32, #tpu.memory_space<smem>>) -> (i32, i32, i32) {
    %c0_i32 = arith.constant 0 : i32
    %c0_i32_0 = arith.constant 0 : i32
    %c0_i32_1 = arith.constant 0 : i32
    return %arg0, %c0_i32, %c0_i32_0 : i32, i32, i32
  }
}

</mosaic_0001>

<llo_original>
// kernel: tpu_custom_call.1
$region0: #{tpu_custom_call.1}
  #allocation0 [shape = 'u32[]', space=smem, size = 0x4, offset = 0x4, fixed_abs, tag = 'smem constant byte address 0x4 - core index']
  #allocation1 [shape = 'u32[144,128]{1,0:T(1,128)}', space=vmem, size = 0x12000, scoped, tag = 'internal scratch']
  #allocation2 [shape = 'f32[1,8,128]{2,1,0:T(8,128)}', space=vmem, size = 0x1000, scoped, tag = 'scratch operand']
  #allocation3 [shape = 's32[1]{0}', space=sflag, size = 0x4, scoped, tag = 'scoped memory for tpu_custom_call.1']
  #allocation4 [shape = 'u8[512]{0}', space=smem, size = 0x200, scoped, tag = 'prefetched SMEM operand 0']
  %s0 = inlined_call_operand.vmem [shape: s32[2], index: 0, kind: input, shape index: {}]
  %s1 = inlined_call_operand.vmem [shape: f32[2,128,8], index: 1, kind: input, shape index: {}]
  %s2 = inlined_call_operand.vmem [shape: f32[2,128,8], index: 2, kind: input, shape index: {}]
  %s3 = inlined_call_operand.vmem [shape: f32[2,8,128], index: 3, kind: input, shape index: {}]
  %s4 = inlined_call_operand.vmem [shape: f32[2,1,128], index: 4, kind: input, shape index: {}]
  %s5 = inlined_call_operand.vmem [shape: f32[2,1,128], index: 5, kind: input, shape index: {}]
  %s6 = inlined_call_operand.hbm [shape: f32[1,8,128], index: 6, kind: output, shape index: {0}]
  %s7 = inlined_call_operand.hbm [shape: f32[1,8,128], index: 7, kind: output, shape index: {1}]
  %8 = xla_tuple %s6, %s7
  %s9 = sld [smem:[#allocation0]]
  $region46: #{tpu_custom_call.1} parent=0
    _
  %s11 = ssub.s32 1, %s9
  %s12 = scalar_select 0, %s11, %s9
  %s13 = sshll.u32 %s0, 4
  %s14 = int_to_ptr.vmem [resolvable:$true] %s13
  %16 = dma.vmem_to_smem %s14, 16, [#allocation4], [#allocation3]
  %17 = dma.done [#allocation3], 16
  %18 = sfence
  $region1: #{tpu_custom_call.1} parent=0
    #allocation5 [shape = 'u8[4096]{0}', space=vmem, size = 0x1000, scoped, tag = 'output window, operand 0, single buffered']
    #allocation6 [shape = 's32[1]{0}', space=sflag, size = 0x4, scoped, tag = 'scoped memory for tpu_custom_call.1']
    #allocation7 [shape = 'u8[4096]{0}', space=vmem, size = 0x1000, scoped, tag = 'output window, operand 1, single buffered']
    #allocation8 [shape = 's32[1]{0}', space=sflag, size = 0x4, scoped, tag = 'scoped memory for tpu_custom_call.1']
    %19 = vsyncpa [#allocation6], 0
    %20 = vsyncpa [#allocation8], 0
    // Predicated region
    $region2: #{tpu_custom_call.1} parent=1 // pred_check
      _
    $region3: #{tpu_custom_call.1} parent=1 // pred_check_branch
      %22 = sbr.rel (0) target = $region5
    $region4: #{tpu_custom_call.1} parent=1 // pred_region
      _
    $region5: #{tpu_custom_call.1} parent=1 // pred_fallthru
      _
    // Predicated region
    $region6: #{tpu_custom_call.1} parent=1 // pred_check
      _
    $region7: #{tpu_custom_call.1} parent=1 // pred_check_branch
      %24 = sbr.rel (0) target = $region9
    $region8: #{tpu_custom_call.1} parent=1 // pred_region
      _
    $region9: #{tpu_custom_call.1} parent=1 // pred_fallthru
      _
    // Predicated region
    $region10: #{tpu_custom_call.1} parent=1 // pred_check
      _
    $region11: #{tpu_custom_call.1} parent=1 // pred_check_branch
      %26 = sbr.rel (0) target = $region13
    $region12: #{tpu_custom_call.1} parent=1 // pred_region
      _
    $region13: #{tpu_custom_call.1} parent=1 // pred_fallthru
      _
    // Predicated region
    $region14: #{tpu_custom_call.1} parent=1 // pred_check
      _
    $region15: #{tpu_custom_call.1} parent=1 // pred_check_branch
      %28 = sbr.rel (0) target = $region17
    $region16: #{tpu_custom_call.1} parent=1 // pred_region
      _
    $region17: #{tpu_custom_call.1} parent=1 // pred_fallthru
      _
    // Predicated region
    $region18: #{tpu_custom_call.1} parent=1 // pred_check
      _
    $region19: #{tpu_custom_call.1} parent=1 // pred_check_branch
      %30 = sbr.rel (0) target = $region21
    $region20: #{tpu_custom_call.1} parent=1 // pred_region
      _
    $region21: #{tpu_custom_call.1} parent=1 // pred_fallthru
      _
    %s31 = smul.u32 0, 2
    %p32 = scmp.eq.s32.totalorder 0, 0
    // Predicated region
    $region22: #{tpu_custom_call.1} parent=1 // pred_check
      %p33 = pneg %p32
    $region23: #{tpu_custom_call.1} parent=1 // pred_check_branch
      %35 = sbr.rel (%p33) target = $region25
    $region24: #{tpu_custom_call.1} parent=1 // pred_region
      %36 = vst [vmem:[#allocation2] sm:$0xff] 0.0
    $region25: #{tpu_custom_call.1} parent=1 // pred_fallthru
      _
    %s37 = smul.u32 0, 128
    %v38 = vlaneseq
    %v39 = vshrl.u32 %v38, 7
    %v40 = vadd.s32 %v39, 8
    %v41 = vadd.s32 %v39, 16
    %v42 = vadd.s32 %v39, 24
    %v43 = vadd.s32 %v39, 32
    %v44 = vadd.s32 %v39, 40
    %v45 = vadd.s32 %v39, 48
    %v46 = vadd.s32 %v39, 56
    %v47 = vadd.s32 %v39, 64
    %v48 = vadd.s32 %v39, 72
    %v49 = vadd.s32 %v39, 80
    %v50 = vadd.s32 %v39, 88
    %v51 = vadd.s32 %v39, 96
    %v52 = vadd.s32 %v39, 104
    %v53 = vadd.s32 %v39, 112
    %v54 = vadd.s32 %v39, 120
    %v55 = vstv %s37
    %v56 = vadd.s32 %v55, %v39
    %v57 = vadd.s32 %v55, %v40
    %v58 = vadd.s32 %v55, %v41
    %v59 = vadd.s32 %v55, %v42
    %v60 = vadd.s32 %v55, %v43
    %v61 = vadd.s32 %v55, %v44
    %v62 = vadd.s32 %v55, %v45
    %v63 = vadd.s32 %v55, %v46
    %v64 = vadd.s32 %v55, %v47
    %v65 = vadd.s32 %v55, %v48
    %v66 = vadd.s32 %v55, %v49
    %v67 = vadd.s32 %v55, %v50
    %v68 = vadd.s32 %v55, %v51
    %v69 = vadd.s32 %v55, %v52
    %v70 = vadd.s32 %v55, %v53
    %v71 = vadd.s32 %v55, %v54
    %s72 = sld [smem:[#allocation4 + %s31]]
    %v73 = vstv %s72
    %vm74 = vcmp.ge.s32.totalorder %v56, %v73
    %vm75 = vcmp.ge.s32.totalorder %v57, %v73
    %vm76 = vcmp.ge.s32.totalorder %v58, %v73
    %vm77 = vcmp.ge.s32.totalorder %v59, %v73
    %vm78 = vcmp.ge.s32.totalorder %v60, %v73
    %vm79 = vcmp.ge.s32.totalorder %v61, %v73
    %vm80 = vcmp.ge.s32.totalorder %v62, %v73
    %vm81 = vcmp.ge.s32.totalorder %v63, %v73
    %vm82 = vcmp.ge.s32.totalorder %v64, %v73
    %vm83 = vcmp.ge.s32.totalorder %v65, %v73
    %vm84 = vcmp.ge.s32.totalorder %v66, %v73
    %vm85 = vcmp.ge.s32.totalorder %v67, %v73
    %vm86 = vcmp.ge.s32.totalorder %v68, %v73
    %vm87 = vcmp.ge.s32.totalorder %v69, %v73
    %vm88 = vcmp.ge.s32.totalorder %v70, %v73
    %vm89 = vcmp.ge.s32.totalorder %v71, %v73
    %v90 = vld [vmem:[%s1] sm:$0xff]
    %v91 = vld [vmem:[%s1 + $0x8] sm:$0xff]
    %v92 = vld [vmem:[%s1 + $0x10] sm:$0xff]
    %v93 = vld [vmem:[%s1 + $0x18] sm:$0xff]
    %v94 = vld [vmem:[%s1 + $0x20] sm:$0xff]
    %v95 = vld [vmem:[%s1 + $0x28] sm:$0xff]
    %v96 = vld [vmem:[%s1 + $0x30] sm:$0xff]
    %v97 = vld [vmem:[%s1 + $0x38] sm:$0xff]
    %v98 = vld [vmem:[%s1 + $0x40] sm:$0xff]
    %v99 = vld [vmem:[%s1 + $0x48] sm:$0xff]
    %v100 = vld [vmem:[%s1 + $0x50] sm:$0xff]
    %v101 = vld [vmem:[%s1 + $0x58] sm:$0xff]
    %v102 = vld [vmem:[%s1 + $0x60] sm:$0xff]
    %v103 = vld [vmem:[%s1 + $0x68] sm:$0xff]
    %v104 = vld [vmem:[%s1 + $0x70] sm:$0xff]
    %v105 = vld [vmem:[%s1 + $0x78] sm:$0xff]
    %v106 = vld [vmem:[%s2] sm:$0xff]
    %v107 = vld [vmem:[%s2 + $0x8] sm:$0xff]
    %v108 = vld [vmem:[%s2 + $0x10] sm:$0xff]
    %v109 = vld [vmem:[%s2 + $0x18] sm:$0xff]
    %v110 = vld [vmem:[%s2 + $0x20] sm:$0xff]
    %v111 = vld [vmem:[%s2 + $0x28] sm:$0xff]
    %v112 = vld [vmem:[%s2 + $0x30] sm:$0xff]
    %v113 = vld [vmem:[%s2 + $0x38] sm:$0xff]
    %v114 = vld [vmem:[%s2 + $0x40] sm:$0xff]
    %v115 = vld [vmem:[%s2 + $0x48] sm:$0xff]
    %v116 = vld [vmem:[%s2 + $0x50] sm:$0xff]
    %v117 = vld [vmem:[%s2 + $0x58] sm:$0xff]
    %v118 = vld [vmem:[%s2 + $0x60] sm:$0xff]
    %v119 = vld [vmem:[%s2 + $0x68] sm:$0xff]
    %v120 = vld [vmem:[%s2 + $0x70] sm:$0xff]
    %v121 = vld [vmem:[%s2 + $0x78] sm:$0xff]
    %v122 = vld [vmem:[%s3] sm:$0xff]
    %123 = vxpose.xlu0.b32.start [1/16] %v122, 128
    %124 = vxpose.xlu0.b32.cont [2/16] 0.0, 128
    %125 = vxpose.xlu0.b32.cont [3/16] 0.0, 128
    %126 = vxpose.xlu0.b32.cont [4/16] 0.0, 128
    %127 = vxpose.xlu0.b32.cont [5/16] 0.0, 128
    %128 = vxpose.xlu0.b32.cont [6/16] 0.0, 128
    %129 = vxpose.xlu0.b32.cont [7/16] 0.0, 128
    %130 = vxpose.xlu0.b32.cont [8/16] 0.0, 128
    %131 = vxpose.xlu0.b32.cont [9/16] 0.0, 128
    %132 = vxpose.xlu0.b32.cont [10/16] 0.0, 128
    %133 = vxpose.xlu0.b32.cont [11/16] 0.0, 128
    %134 = vxpose.xlu0.b32.cont [12/16] 0.0, 128
    %135 = vxpose.xlu0.b32.cont [13/16] 0.0, 128
    %136 = vxpose.xlu0.b32.cont [14/16] 0.0, 128
    %137 = vxpose.xlu0.b32.cont [15/16] 0.0, 128
    %138 = vxpose.xlu0.b32.end [16/16] 0.0, 128
    %v139 = vpop.trf.xlu0
    %v140 = vpop.trf.xlu0
    %v141 = vpop.trf.xlu0
    %v142 = vpop.trf.xlu0
    %v143 = vpop.trf.xlu0
    %v144 = vpop.trf.xlu0
    %v145 = vpop.trf.xlu0
    %v146 = vpop.trf.xlu0
    %v147 = vpop.trf.xlu0
    %v148 = vpop.trf.xlu0
    %v149 = vpop.trf.xlu0
    %v150 = vpop.trf.xlu0
    %v151 = vpop.trf.xlu0
    %v152 = vpop.trf.xlu0
    %v153 = vpop.trf.xlu0
    %v154 = vpop.trf.xlu0
    %v155 = vsub.f32 %v90, %v139
    %v156 = vsub.f32 %v91, %v140
    %v157 = vsub.f32 %v92, %v141
    %v158 = vsub.f32 %v93, %v142
    %v159 = vsub.f32 %v94, %v143
    %v160 = vsub.f32 %v95, %v144
    %v161 = vsub.f32 %v96, %v145
    %v162 = vsub.f32 %v97, %v146
    %v163 = vsub.f32 %v98, %v147
    %v164 = vsub.f32 %v99, %v148
    %v165 = vsub.f32 %v100, %v149
    %v166 = vsub.f32 %v101, %v150
    %v167 = vsub.f32 %v102, %v151
    %v168 = vsub.f32 %v103, %v152
    %v169 = vsub.f32 %v104, %v153
    %v170 = vsub.f32 %v105, %v154
    %v171 = vsub.f32 %v106, %v139
    %v172 = vsub.f32 %v107, %v140
    %v173 = vsub.f32 %v108, %v141
    %v174 = vsub.f32 %v109, %v142
    %v175 = vsub.f32 %v110, %v143
    %v176 = vsub.f32 %v111, %v144
    %v177 = vsub.f32 %v112, %v145
    %v178 = vsub.f32 %v113, %v146
    %v179 = vsub.f32 %v114, %v147
    %v180 = vsub.f32 %v115, %v148
    %v181 = vsub.f32 %v116, %v149
    %v182 = vsub.f32 %v117, %v150
    %v183 = vsub.f32 %v118, %v151
    %v184 = vsub.f32 %v119, %v152
    %v185 = vsub.f32 %v120, %v153
    %v186 = vsub.f32 %v121, %v154
    %v187 = vmul.f32 %v155, %v155
    %v188 = vmul.f32 %v156, %v156
    %v189 = vmul.f32 %v157, %v157
    %v190 = vmul.f32 %v158, %v158
    %v191 = vmul.f32 %v159, %v159
    %v192 = vmul.f32 %v160, %v160
    %v193 = vmul.f32 %v161, %v161
    %v194 = vmul.f32 %v162, %v162
    %v195 = vmul.f32 %v163, %v163
    %v196 = vmul.f32 %v164, %v164
    %v197 = vmul.f32 %v165, %v165
    %v198 = vmul.f32 %v166, %v166
    %v199 = vmul.f32 %v167, %v167
    %v200 = vmul.f32 %v168, %v168
    %v201 = vmul.f32 %v169, %v169
    %v202 = vmul.f32 %v170, %v170
    %v203 = vmul.f32 %v171, %v171
    %v204 = vmul.f32 %v172, %v172
    %v205 = vmul.f32 %v173, %v173
    %v206 = vmul.f32 %v174, %v174
    %v207 = vmul.f32 %v175, %v175
    %v208 = vmul.f32 %v176, %v176
    %v209 = vmul.f32 %v177, %v177
    %v210 = vmul.f32 %v178, %v178
    %v211 = vmul.f32 %v179, %v179
    %v212 = vmul.f32 %v180, %v180
    %v213 = vmul.f32 %v181, %v181
    %v214 = vmul.f32 %v182, %v182
    %v215 = vmul.f32 %v183, %v183
    %v216 = vmul.f32 %v184, %v184
    %v217 = vmul.f32 %v185, %v185
    %v218 = vmul.f32 %v186, %v186
    %v219 = vadd.f32 %v187, %v203
    %v220 = vadd.f32 %v188, %v204
    %v221 = vadd.f32 %v189, %v205
    %v222 = vadd.f32 %v190, %v206
    %v223 = vadd.f32 %v191, %v207
    %v224 = vadd.f32 %v192, %v208
    %v225 = vadd.f32 %v193, %v209
    %v226 = vadd.f32 %v194, %v210
    %v227 = vadd.f32 %v195, %v211
    %v228 = vadd.f32 %v196, %v212
    %v229 = vadd.f32 %v197, %v213
    %v230 = vadd.f32 %v198, %v214
    %v231 = vadd.f32 %v199, %v215
    %v232 = vadd.f32 %v200, %v216
    %v233 = vadd.f32 %v201, %v217
    %v234 = vadd.f32 %v202, %v218
    %v235 = vsel %vm74, 1, 0
    %v236 = vsel %vm75, 1, 0
    %v237 = vsel %vm76, 1, 0
    %v238 = vsel %vm77, 1, 0
    %v239 = vsel %vm78, 1, 0
    %v240 = vsel %vm79, 1, 0
    %v241 = vsel %vm80, 1, 0
    %v242 = vsel %vm81, 1, 0
    %v243 = vsel %vm82, 1, 0
    %v244 = vsel %vm83, 1, 0
    %v245 = vsel %vm84, 1, 0
    %v246 = vsel %vm85, 1, 0
    %v247 = vsel %vm86, 1, 0
    %v248 = vsel %vm87, 1, 0
    %v249 = vsel %vm88, 1, 0
    %v250 = vsel %vm89, 1, 0
    %vm251 = vcmp.eq.s32.totalorder %v235, 1
    %vm252 = vcmp.eq.s32.totalorder %v236, 1
    %vm253 = vcmp.eq.s32.totalorder %v237, 1
    %vm254 = vcmp.eq.s32.totalorder %v238, 1
    %vm255 = vcmp.eq.s32.totalorder %v239, 1
    %vm256 = vcmp.eq.s32.totalorder %v240, 1
    %vm257 = vcmp.eq.s32.totalorder %v241, 1
    %vm258 = vcmp.eq.s32.totalorder %v242, 1
    %vm259 = vcmp.eq.s32.totalorder %v243, 1
    %vm260 = vcmp.eq.s32.totalorder %v244, 1
    %vm261 = vcmp.eq.s32.totalorder %v245, 1
    %vm262 = vcmp.eq.s32.totalorder %v246, 1
    %vm263 = vcmp.eq.s32.totalorder %v247, 1
    %vm264 = vcmp.eq.s32.totalorder %v248, 1
    %vm265 = vcmp.eq.s32.totalorder %v249, 1
    %vm266 = vcmp.eq.s32.totalorder %v250, 1
    %v267 = vsel %vm251, 0.0, %v219
    %v268 = vsel %vm252, 0.0, %v220
    %v269 = vsel %vm253, 0.0, %v221
    %v270 = vsel %vm254, 0.0, %v222
    %v271 = vsel %vm255, 0.0, %v223
    %v272 = vsel %vm256, 0.0, %v224
    %v273 = vsel %vm257, 0.0, %v225
    %v274 = vsel %vm258, 0.0, %v226
    %v275 = vsel %vm259, 0.0, %v227
    %v276 = vsel %vm260, 0.0, %v228
    %v277 = vsel %vm261, 0.0, %v229
    %v278 = vsel %vm262, 0.0, %v230
    %v279 = vsel %vm263, 0.0, %v231
    %v280 = vsel %vm264, 0.0, %v232
    %v281 = vsel %vm265, 0.0, %v233
    %v282 = vsel %vm266, 0.0, %v234
    %vm283 = vcmask 64512
    %v284 = vsel %vm283, %v267, 0.0
    %v285 = vsel %vm283, %v268, 0.0
    %v286 = vadd.f32 %v284, %v285
    %v287 = vsel %vm283, %v269, 0.0
    %v288 = vadd.f32 %v286, %v287
    %v289 = vsel %vm283, %v270, 0.0
    %v290 = vadd.f32 %v288, %v289
    %v291 = vsel %vm283, %v271, 0.0
    %v292 = vadd.f32 %v290, %v291
    %v293 = vsel %vm283, %v272, 0.0
    %v294 = vadd.f32 %v292, %v293
    %v295 = vsel %vm283, %v273, 0.0
    %v296 = vadd.f32 %v294, %v295
    %v297 = vsel %vm283, %v274, 0.0
    %v298 = vadd.f32 %v296, %v297
    %v299 = vsel %vm283, %v275, 0.0
    %v300 = vadd.f32 %v298, %v299
    %v301 = vsel %vm283, %v276, 0.0
    %v302 = vadd.f32 %v300, %v301
    %v303 = vsel %vm283, %v277, 0.0
    %v304 = vadd.f32 %v302, %v303
    %v305 = vsel %vm283, %v278, 0.0
    %v306 = vadd.f32 %v304, %v305
    %v307 = vsel %vm283, %v279, 0.0
    %v308 = vadd.f32 %v306, %v307
    %v309 = vsel %vm283, %v280, 0.0
    %v310 = vadd.f32 %v308, %v309
    %v311 = vsel %vm283, %v281, 0.0
    %v312 = vadd.f32 %v310, %v311
    %v313 = vsel %vm283, %v282, 0.0
    %v314 = vadd.f32 %v312, %v313
    %315 = vadd.xlane.f32.xlu0 %v314
    %v316 = vpop.xlane.xlu0 %315
    %v317 = vrot.slane %v316, 4
    %v318 = vadd.f32 %v316, %v317
    %v319 = vrot.slane %v318, 2
    %v320 = vadd.f32 %v318, %v319
    %v321 = vrot.slane %v320, 1
    %v322 = vadd.f32 %v320, %v321
    %s323 = vtos %v322
    %s324 = sadd.f32 %s323, 0.0
    %s325 = sadd.s32 %s31, 1
    %s326 = sld [smem:[#allocation4 + %s325]]
    %v327 = vstv %s326
    %vm328 = vcmp.ge.s32.totalorder %v56, %v327
    %vm329 = vcmp.ge.s32.totalorder %v57, %v327
    %vm330 = vcmp.ge.s32.totalorder %v58, %v327
    %vm331 = vcmp.ge.s32.totalorder %v59, %v327
    %vm332 = vcmp.ge.s32.totalorder %v60, %v327
    %vm333 = vcmp.ge.s32.totalorder %v61, %v327
    %vm334 = vcmp.ge.s32.totalorder %v62, %v327
    %vm335 = vcmp.ge.s32.totalorder %v63, %v327
    %vm336 = vcmp.ge.s32.totalorder %v64, %v327
    %vm337 = vcmp.ge.s32.totalorder %v65, %v327
    %vm338 = vcmp.ge.s32.totalorder %v66, %v327
    %vm339 = vcmp.ge.s32.totalorder %v67, %v327
    %vm340 = vcmp.ge.s32.totalorder %v68, %v327
    %vm341 = vcmp.ge.s32.totalorder %v69, %v327
    %vm342 = vcmp.ge.s32.totalorder %v70, %v327
    %vm343 = vcmp.ge.s32.totalorder %v71, %v327
    %s344 = scalar_lea.vmem %s1, 128
    %v345 = vld [vmem:[%s344] sm:$0xff]
    %v346 = vld [vmem:[%s344 + $0x8] sm:$0xff]
    %v347 = vld [vmem:[%s344 + $0x10] sm:$0xff]
    %v348 = vld [vmem:[%s344 + $0x18] sm:$0xff]
    %v349 = vld [vmem:[%s344 + $0x20] sm:$0xff]
    %v350 = vld [vmem:[%s344 + $0x28] sm:$0xff]
    %v351 = vld [vmem:[%s344 + $0x30] sm:$0xff]
    %v352 = vld [vmem:[%s344 + $0x38] sm:$0xff]
    %v353 = vld [vmem:[%s344 + $0x40] sm:$0xff]
    %v354 = vld [vmem:[%s344 + $0x48] sm:$0xff]
    %v355 = vld [vmem:[%s344 + $0x50] sm:$0xff]
    %v356 = vld [vmem:[%s344 + $0x58] sm:$0xff]
    %v357 = vld [vmem:[%s344 + $0x60] sm:$0xff]
    %v358 = vld [vmem:[%s344 + $0x68] sm:$0xff]
    %v359 = vld [vmem:[%s344 + $0x70] sm:$0xff]
    %v360 = vld [vmem:[%s344 + $0x78] sm:$0xff]
    %s361 = scalar_lea.vmem %s2, 128
    %v362 = vld [vmem:[%s361] sm:$0xff]
    %v363 = vld [vmem:[%s361 + $0x8] sm:$0xff]
    %v364 = vld [vmem:[%s361 + $0x10] sm:$0xff]
    %v365 = vld [vmem:[%s361 + $0x18] sm:$0xff]
    %v366 = vld [vmem:[%s361 + $0x20] sm:$0xff]
    %v367 = vld [vmem:[%s361 + $0x28] sm:$0xff]
    %v368 = vld [vmem:[%s361 + $0x30] sm:$0xff]
    %v369 = vld [vmem:[%s361 + $0x38] sm:$0xff]
    %v370 = vld [vmem:[%s361 + $0x40] sm:$0xff]
    %v371 = vld [vmem:[%s361 + $0x48] sm:$0xff]
    %v372 = vld [vmem:[%s361 + $0x50] sm:$0xff]
    %v373 = vld [vmem:[%s361 + $0x58] sm:$0xff]
    %v374 = vld [vmem:[%s361 + $0x60] sm:$0xff]
    %v375 = vld [vmem:[%s361 + $0x68] sm:$0xff]
    %v376 = vld [vmem:[%s361 + $0x70] sm:$0xff]
    %v377 = vld [vmem:[%s361 + $0x78] sm:$0xff]
    %s378 = scalar_lea.vmem %s3, 8
    %v379 = vld [vmem:[%s378] sm:$0xff]
    %380 = vxpose.xlu0.b32.start [1/16] %v379, 128
    %381 = vxpose.xlu0.b32.cont [2/16] 0.0, 128
    %382 = vxpose.xlu0.b32.cont [3/16] 0.0, 128
    %383 = vxpose.xlu0.b32.cont [4/16] 0.0, 128
    %384 = vxpose.xlu0.b32.cont [5/16] 0.0, 128
    %385 = vxpose.xlu0.b32.cont [6/16] 0.0, 128
    %386 = vxpose.xlu0.b32.cont [7/16] 0.0, 128
    %387 = vxpose.xlu0.b32.cont [8/16] 0.0, 128
    %388 = vxpose.xlu0.b32.cont [9/16] 0.0, 128
    %389 = vxpose.xlu0.b32.cont [10/16] 0.0, 128
    %390 = vxpose.xlu0.b32.cont [11/16] 0.0, 128
    %391 = vxpose.xlu0.b32.cont [12/16] 0.0, 128
    %392 = vxpose.xlu0.b32.cont [13/16] 0.0, 128
    %393 = vxpose.xlu0.b32.cont [14/16] 0.0, 128
    %394 = vxpose.xlu0.b32.cont [15/16] 0.0, 128
    %395 = vxpose.xlu0.b32.end [16/16] 0.0, 128
    %v396 = vpop.trf.xlu0
    %v397 = vpop.trf.xlu0
    %v398 = vpop.trf.xlu0
    %v399 = vpop.trf.xlu0
    %v400 = vpop.trf.xlu0
    %v401 = vpop.trf.xlu0
    %v402 = vpop.trf.xlu0
    %v403 = vpop.trf.xlu0
    %v404 = vpop.trf.xlu0
    %v405 = vpop.trf.xlu0
    %v406 = vpop.trf.xlu0
    %v407 = vpop.trf.xlu0
    %v408 = vpop.trf.xlu0
    %v409 = vpop.trf.xlu0
    %v410 = vpop.trf.xlu0
    %v411 = vpop.trf.xlu0
    %v412 = vsub.f32 %v345, %v396
    %v413 = vsub.f32 %v346, %v397
    %v414 = vsub.f32 %v347, %v398
    %v415 = vsub.f32 %v348, %v399
    %v416 = vsub.f32 %v349, %v400
    %v417 = vsub.f32 %v350, %v401
    %v418 = vsub.f32 %v351, %v402
    %v419 = vsub.f32 %v352, %v403
    %v420 = vsub.f32 %v353, %v404
    %v421 = vsub.f32 %v354, %v405
    %v422 = vsub.f32 %v355, %v406
    %v423 = vsub.f32 %v356, %v407
    %v424 = vsub.f32 %v357, %v408
    %v425 = vsub.f32 %v358, %v409
    %v426 = vsub.f32 %v359, %v410
    %v427 = vsub.f32 %v360, %v411
    %v428 = vsub.f32 %v362, %v396
    %v429 = vsub.f32 %v363, %v397
    %v430 = vsub.f32 %v364, %v398
    %v431 = vsub.f32 %v365, %v399
    %v432 = vsub.f32 %v366, %v400
    %v433 = vsub.f32 %v367, %v401
    %v434 = vsub.f32 %v368, %v402
    %v435 = vsub.f32 %v369, %v403
    %v436 = vsub.f32 %v370, %v404
    %v437 = vsub.f32 %v371, %v405
    %v438 = vsub.f32 %v372, %v406
    %v439 = vsub.f32 %v373, %v407
    %v440 = vsub.f32 %v374, %v408
    %v441 = vsub.f32 %v375, %v409
    %v442 = vsub.f32 %v376, %v410
    %v443 = vsub.f32 %v377, %v411
    %v444 = vmul.f32 %v412, %v412
    %v445 = vmul.f32 %v413, %v413
    %v446 = vmul.f32 %v414, %v414
    %v447 = vmul.f32 %v415, %v415
    %v448 = vmul.f32 %v416, %v416
    %v449 = vmul.f32 %v417, %v417
    %v450 = vmul.f32 %v418, %v418
    %v451 = vmul.f32 %v419, %v419
    %v452 = vmul.f32 %v420, %v420
    %v453 = vmul.f32 %v421, %v421
    %v454 = vmul.f32 %v422, %v422
    %v455 = vmul.f32 %v423, %v423
    %v456 = vmul.f32 %v424, %v424
    %v457 = vmul.f32 %v425, %v425
    %v458 = vmul.f32 %v426, %v426
    %v459 = vmul.f32 %v427, %v427
    %v460 = vmul.f32 %v428, %v428
    %v461 = vmul.f32 %v429, %v429
    %v462 = vmul.f32 %v430, %v430
    %v463 = vmul.f32 %v431, %v431
    %v464 = vmul.f32 %v432, %v432
    %v465 = vmul.f32 %v433, %v433
    %v466 = vmul.f32 %v434, %v434
    %v467 = vmul.f32 %v435, %v435
    %v468 = vmul.f32 %v436, %v436
    %v469 = vmul.f32 %v437, %v437
    %v470 = vmul.f32 %v438, %v438
    %v471 = vmul.f32 %v439, %v439
    %v472 = vmul.f32 %v440, %v440
    %v473 = vmul.f32 %v441, %v441
    %v474 = vmul.f32 %v442, %v442
    %v475 = vmul.f32 %v443, %v443
    %v476 = vadd.f32 %v444, %v460
    %v477 = vadd.f32 %v445, %v461
    %v478 = vadd.f32 %v446, %v462
    %v479 = vadd.f32 %v447, %v463
    %v480 = vadd.f32 %v448, %v464
    %v481 = vadd.f32 %v449, %v465
    %v482 = vadd.f32 %v450, %v466
    %v483 = vadd.f32 %v451, %v467
    %v484 = vadd.f32 %v452, %v468
    %v485 = vadd.f32 %v453, %v469
    %v486 = vadd.f32 %v454, %v470
    %v487 = vadd.f32 %v455, %v471
    %v488 = vadd.f32 %v456, %v472
    %v489 = vadd.f32 %v457, %v473
    %v490 = vadd.f32 %v458, %v474
    %v491 = vadd.f32 %v459, %v475
    %v492 = vsel %vm328, 1, 0
    %v493 = vsel %vm329, 1, 0
    %v494 = vsel %vm330, 1, 0
    %v495 = vsel %vm331, 1, 0
    %v496 = vsel %vm332, 1, 0
    %v497 = vsel %vm333, 1, 0
    %v498 = vsel %vm334, 1, 0
    %v499 = vsel %vm335, 1, 0
    %v500 = vsel %vm336, 1, 0
    %v501 = vsel %vm337, 1, 0
    %v502 = vsel %vm338, 1, 0
    %v503 = vsel %vm339, 1, 0
    %v504 = vsel %vm340, 1, 0
    %v505 = vsel %vm341, 1, 0
    %v506 = vsel %vm342, 1, 0
    %v507 = vsel %vm343, 1, 0
    %vm508 = vcmp.eq.s32.totalorder %v492, 1
    %vm509 = vcmp.eq.s32.totalorder %v493, 1
    %vm510 = vcmp.eq.s32.totalorder %v494, 1
    %vm511 = vcmp.eq.s32.totalorder %v495, 1
    %vm512 = vcmp.eq.s32.totalorder %v496, 1
    %vm513 = vcmp.eq.s32.totalorder %v497, 1
    %vm514 = vcmp.eq.s32.totalorder %v498, 1
    %vm515 = vcmp.eq.s32.totalorder %v499, 1
    %vm516 = vcmp.eq.s32.totalorder %v500, 1
    %vm517 = vcmp.eq.s32.totalorder %v501, 1
    %vm518 = vcmp.eq.s32.totalorder %v502, 1
    %vm519 = vcmp.eq.s32.totalorder %v503, 1
    %vm520 = vcmp.eq.s32.totalorder %v504, 1
    %vm521 = vcmp.eq.s32.totalorder %v505, 1
    %vm522 = vcmp.eq.s32.totalorder %v506, 1
    %vm523 = vcmp.eq.s32.totalorder %v507, 1
    %v524 = vsel %vm508, 0.0, %v476
    %v525 = vsel %vm509, 0.0, %v477
    %v526 = vsel %vm510, 0.0, %v478
    %v527 = vsel %vm511, 0.0, %v479
    %v528 = vsel %vm512, 0.0, %v480
    %v529 = vsel %vm513, 0.0, %v481
    %v530 = vsel %vm514, 0.0, %v482
    %v531 = vsel %vm515, 0.0, %v483
    %v532 = vsel %vm516, 0.0, %v484
    %v533 = vsel %vm517, 0.0, %v485
    %v534 = vsel %vm518, 0.0, %v486
    %v535 = vsel %vm519, 0.0, %v487
    %v536 = vsel %vm520, 0.0, %v488
    %v537 = vsel %vm521, 0.0, %v489
    %v538 = vsel %vm522, 0.0, %v490
    %v539 = vsel %vm523, 0.0, %v491
    %v540 = vsel %vm283, %v524, 0.0
    %v541 = vsel %vm283, %v525, 0.0
    %v542 = vadd.f32 %v540, %v541
    %v543 = vsel %vm283, %v526, 0.0
    %v544 = vadd.f32 %v542, %v543
    %v545 = vsel %vm283, %v527, 0.0
    %v546 = vadd.f32 %v544, %v545
    %v547 = vsel %vm283, %v528, 0.0
    %v548 = vadd.f32 %v546, %v547
    %v549 = vsel %vm283, %v529, 0.0
    %v550 = vadd.f32 %v548, %v549
    %v551 = vsel %vm283, %v530, 0.0
    %v552 = vadd.f32 %v550, %v551
    %v553 = vsel %vm283, %v531, 0.0
    %v554 = vadd.f32 %v552, %v553
    %v555 = vsel %vm283, %v532, 0.0
    %v556 = vadd.f32 %v554, %v555
    %v557 = vsel %vm283, %v533, 0.0
    %v558 = vadd.f32 %v556, %v557
    %v559 = vsel %vm283, %v534, 0.0
    %v560 = vadd.f32 %v558, %v559
    %v561 = vsel %vm283, %v535, 0.0
    %v562 = vadd.f32 %v560, %v561
    %v563 = vsel %vm283, %v536, 0.0
    %v564 = vadd.f32 %v562, %v563
    %v565 = vsel %vm283, %v537, 0.0
    %v566 = vadd.f32 %v564, %v565
    %v567 = vsel %vm283, %v538, 0.0
    %v568 = vadd.f32 %v566, %v567
    %v569 = vsel %vm283, %v539, 0.0
    %v570 = vadd.f32 %v568, %v569
    %571 = vadd.xlane.f32.xlu0 %v570
    %v572 = vpop.xlane.xlu0 %571
    %v573 = vrot.slane %v572, 4
    %v574 = vadd.f32 %v572, %v573
    %v575 = vrot.slane %v574, 2
    %v576 = vadd.f32 %v574, %v575
    %v577 = vrot.slane %v576, 1
    %v578 = vadd.f32 %v576, %v577
    %s579 = vtos %v578
    %s580 = sadd.f32 %s324, %s579
    %v581 = vld [vmem:[#allocation2] sm:$0xff]
    %v582 = vstv %s580
    %v583 = vadd.f32 %v581, %v582
    %584 = vst [vmem:[#allocation2] sm:$0xff] %v583
    // Predicated region
    $region26: #{tpu_custom_call.1} parent=1 // pred_check
      %p585 = pneg %p32
    $region27: #{tpu_custom_call.1} parent=1 // pred_check_branch
      %587 = sbr.rel (%p585) target = $region29
    $region28: #{tpu_custom_call.1} parent=1 // pred_region
      %v588 = vld [vmem:[#allocation2] sm:$0xff]
      %589 = vst [vmem:[#allocation5] sm:$0xff] %v588
      %v590 = vld [vmem:[%s4] sm:$0x1]
      %v591 = vld [vmem:[%s4 + $0x1] sm:$0x1]
      %v592 = vld [vmem:[%s5] sm:$0x1]
      %v593 = vld [vmem:[%s5 + $0x1] sm:$0x1]
      %v594 = vmax.f32 %v590, 0.0
      %v595 = vmax.f32 %v591, 0.0
      %v596 = vmul.f32 %v590, %v592
      %v597 = vmul.f32 %v591, %v593
      %v598 = vsub.f32 %v594, %v596
      %v599 = vsub.f32 %v595, %v597
      %v600 = vand.u32 2147483647, %v590
      %v601 = vand.u32 2147483647, %v591
      %v602 = vsub.f32 0.0, %v600
      %v603 = vsub.f32 0.0, %v601
      %v604 = vmul.f32 %v602, 1.442695
      %v605 = vpow.pop %v604
      %v606 = vmul.f32 %v603, 1.442695
      %v607 = vpow.pop %v606
      %v608 = vadd.f32 %v605, 1.0
      %v609 = vlog2.pop %v608
      %v610 = vmul.f32 %v609, 0.6931472
      %v611 = vmul.f32 -0.5, %v605
      %v612 = vadd.f32 %v611, 1.0
      %v613 = vmul.f32 %v612, %v605
      %v614 = vand.u32 2147483647, %v605
      %vm615 = vcmp.lt.f32.partialorder %v614, 0.0004427343
      %v616 = vsel %vm615, %v613, %v610
      %v617 = vadd.f32 %v607, 1.0
      %v618 = vlog2.pop %v617
      %v619 = vmul.f32 %v618, 0.6931472
      %v620 = vmul.f32 -0.5, %v607
      %v621 = vadd.f32 %v620, 1.0
      %v622 = vmul.f32 %v621, %v607
      %v623 = vand.u32 2147483647, %v607
      %vm624 = vcmp.lt.f32.partialorder %v623, 0.0004427343
      %v625 = vsel %vm624, %v622, %v619
      %v626 = vadd.f32 %v598, %v616
      %v627 = vadd.f32 %v599, %v625
      %vm628 = vcmask 1040384
      %v629 = vsel %vm628, %v626, 0.0
      %v630 = vsel %vm628, %v627, 0.0
      %v631 = vadd.f32 %v629, %v630
      %632 = vadd.xlane.f32.xlu0 %v631
      %v633 = vpop.xlane.xlu0 %632
      %v634 = vrot.slane %v633, 4
      %v635 = vadd.f32 %v633, %v634
      %v636 = vrot.slane %v635, 2
      %v637 = vadd.f32 %v635, %v636
      %v638 = vrot.slane %v637, 1
      %v639 = vadd.f32 %v637, %v638
      %s640 = vtos %v639
      %v641 = vstv %s640
      %642 = vst [vmem:[#allocation7] sm:$0xff] %v641
    $region29: #{tpu_custom_call.1} parent=1 // pred_fallthru
      _
    // Predicated region
    $region30: #{tpu_custom_call.1} parent=1 // pred_check
      _
    $region31: #{tpu_custom_call.1} parent=1 // pred_check_branch
      %644 = sbr.rel (0) target = $region33
    $region32: #{tpu_custom_call.1} parent=1 // pred_region
      %s646 = ssub.s32 128, 128
      %647 = vsyncadd [#allocation6], %s646
      %s649 = sshll.u32 [#allocation5], 4
      %s650 = int_to_ptr.vmem [resolvable:$true] %s649
      %652 = dma.vmem_to_hbm [thread:$0]  %s650, 128, %s6, [#allocation6]
    $region33: #{tpu_custom_call.1} parent=1 // pred_fallthru
      _
    // Predicated region
    $region34: #{tpu_custom_call.1} parent=1 // pred_check
      _
    $region35: #{tpu_custom_call.1} parent=1 // pred_check_branch
      %654 = sbr.rel (0) target = $region37
    $region36: #{tpu_custom_call.1} parent=1 // pred_region
      %s656 = ssub.s32 128, 128
      %657 = vsyncadd [#allocation8], %s656
      %s659 = sshll.u32 [#allocation7], 4
      %s660 = int_to_ptr.vmem [resolvable:$true] %s659
      %662 = dma.vmem_to_hbm [thread:$0]  %s660, 128, %s7, [#allocation8]
    $region37: #{tpu_custom_call.1} parent=1 // pred_fallthru
      _
    // Predicated region
    $region38: #{tpu_custom_call.1} parent=1 // pred_check
      _
    $region39: #{tpu_custom_call.1} parent=1 // pred_check_branch
      %664 = sbr.rel (0) target = $region41
    $region40: #{tpu_custom_call.1} parent=1 // pred_region
      %665 = dma.done [#allocation6], 128
    $region41: #{tpu_custom_call.1} parent=1 // pred_fallthru
      _
    // Predicated region
    $region42: #{tpu_custom_call.1} parent=1 // pred_check
      _
    $region43: #{tpu_custom_call.1} parent=1 // pred_check_branch
      %667 = sbr.rel (0) target = $region45
    $region44: #{tpu_custom_call.1} parent=1 // pred_region
      %668 = dma.done [#allocation8], 128
    $region45: #{tpu_custom_call.1} parent=1 // pred_fallthru
      _
    %669 = vsyncpa [#allocation6], 1
    %670 = vsyncpa [#allocation8], 1

</llo_original>
